<compile_context>
chip_gen: v7x
topology: tpu7x:2x2x1
jax: 0.10.0
libtpu: 0.0.40
codegen_flags: <defaults>
</compile_context>

<pallas_src>
import jax
import jax.numpy as jnp
from jax import lax
from jax.experimental import pallas as pl
from jax.experimental.pallas import tpu as pltpu

HIDDEN_SIZES = [256, 256]
WITH_BATCH_NORM = True   # matches the script's global (LayerNorm layers are inserted)
LN_EPS = 1e-5


def _round_up(n, m):
    return ((n + m - 1) // m) * m


def _layernorm_relu(h, gamma, beta):
    # Two-pass statistics (biased variance, matching nn.LayerNorm) — robust to a large
    # common offset in the post-matmul activations.
    mu = jnp.mean(h, axis=-1, keepdims=True)
    c = h - mu
    var = jnp.mean(c * c, axis=-1, keepdims=True)
    inv = lax.rsqrt(var + LN_EPS)
    return jnp.maximum(c * inv * gamma + beta, 0.0)


def inverse_dynamics_kernel(x_ref,
                            w1_ref, bgb1_ref,
                            w2_ref, bgb2_ref,
                            w3_ref, b3_ref,
                            o_ref):
    # Layer 1: Linear (bf16 operands, f32 accumulate) -> LayerNorm -> ReLU.
    # x arrives f32 and narrow (in_dim lanes); cast in-kernel, Mosaic pads K internally.
    x = x_ref[...].astype(jnp.bfloat16)
    bgb1 = bgb1_ref[...]                       # rows: [bias, gamma, beta]
    h = jnp.dot(x, w1_ref[...], preferred_element_type=jnp.float32) + bgb1[0:1, :]
    h = _layernorm_relu(h, bgb1[1:2, :], bgb1[2:3, :])

    # Layer 2: Linear -> LayerNorm -> ReLU
    bgb2 = bgb2_ref[...]
    h = jnp.dot(h.astype(jnp.bfloat16), w2_ref[...],
                preferred_element_type=jnp.float32) + bgb2[0:1, :]
    h = _layernorm_relu(h, bgb2[1:2, :], bgb2[2:3, :])

    # Output layer (no activation; with_sigmoid=False). Narrow (out_dim-lane) store.
    o_ref[...] = (jnp.dot(h.astype(jnp.bfloat16), w3_ref[...],
                          preferred_element_type=jnp.float32)
                  + b3_ref[...]).astype(o_ref.dtype)


def prepare_params(params):
    """One-time layout prep: cast matmul weights to bf16 and pack each LayerNorm layer's
    bias/gamma/beta rows into a single (3, hidden) f32 array (fewer DMA descriptors)."""
    return dict(
        w1=params["w1"].astype(jnp.bfloat16),
        bgb1=jnp.concatenate([params["b1"], params["g1"], params["be1"]], axis=0),
        w2=params["w2"].astype(jnp.bfloat16),
        bgb2=jnp.concatenate([params["b2"], params["g2"], params["be2"]], axis=0),
        w3=params["w3"].astype(jnp.bfloat16),
        b3=params["b3"],
    )


def inverse_dynamics_forward(x, prepared, *, tm=128):
    """x: (B, input_size) float32. prepared: output of prepare_params()."""
    B, in_dim = x.shape
    h0 = prepared["w1"].shape[1]
    h1 = prepared["w2"].shape[1]
    out_dim = prepared["w3"].shape[1]
    assert prepared["w1"].shape[0] == in_dim

    # Row tile: multiple of 8, <= tm, and capped at ~half the batch so the grid has >= 2
    # steps whenever B >= 9 (keeps both v7x TensorCores busy; ~0.35us/step on 1-TC chips).
    b_round = _round_up(B, 8)
    half = _round_up(-(-b_round // 2), 8)
    tm_eff = max(8, min(tm, half))
    B_pad = _round_up(B, tm_eff)

    # Only a row pad (zeros) when B is not a multiple of the tile; no lane padding, no
    # wrapper-side dtype cast.
    x_p = x if B_pad == B else jnp.pad(x, ((0, B_pad - B), (0, 0)))

    full = lambda shape: pl.BlockSpec(shape, lambda i: (0, 0))

    flops = 2 * B_pad * (in_dim * h0 + h0 * h1 + h1 * out_dim)
    bytes_accessed = (B_pad * in_dim * 4 + B_pad * out_dim * 4          # activations (f32)
                      + 2 * (in_dim * h0 + h0 * h1 + h1 * out_dim)       # bf16 weights
                      + 4 * (3 * h0 + 3 * h1 + out_dim))                 # f32 bias/LN rows
    cost = pl.CostEstimate(flops=flops, transcendentals=2 * B_pad,
                           bytes_accessed=bytes_accessed)

    out = pl.pallas_call(
        inverse_dynamics_kernel,
        out_shape=jax.ShapeDtypeStruct((B_pad, out_dim), jnp.float32),
        grid_spec=pltpu.PrefetchScalarGridSpec(
            num_scalar_prefetch=0,
            grid=(B_pad // tm_eff,),
            in_specs=[
                pl.BlockSpec((tm_eff, in_dim), lambda i: (i, 0)),   # x tile (narrow lanes OK)
                full((in_dim, h0)), full((3, h0)),                  # layer 1 weights / b,g,beta
                full((h0, h1)),     full((3, h1)),                  # layer 2 weights / b,g,beta
                full((h1, out_dim)), full((1, out_dim)),            # output layer
            ],
            out_specs=pl.BlockSpec((tm_eff, out_dim), lambda i: (i, 0)),
        ),
        # Batch axis is embarrassingly parallel -> shards across TensorCores (v7x megacore).
        compiler_params=pltpu.CompilerParams(
            dimension_semantics=("parallel",)),
        cost_estimate=cost,
    )(x_p,
      prepared["w1"], prepared["bgb1"],
      prepared["w2"], prepared["bgb2"],
      prepared["w3"], prepared["b3"])

    # Only the cheap row slice remains (nothing to slice on the lane axis).
    return out if B_pad == B else out[:B]


def init_params(key, input_size, output_size):
    """Deterministic init mimicking PyTorch defaults:
       Linear: U(-1/sqrt(fan_in), 1/sqrt(fan_in)); LayerNorm: gamma=1, beta=0."""
    h0, h1 = HIDDEN_SIZES
    ks = jax.random.split(key, 6)

    def linear(kw, kb, fan_in, fan_out):
        bound = 1.0 / jnp.sqrt(fan_in)
        w = jax.random.uniform(kw, (fan_in, fan_out), jnp.float32, -bound, bound)
        b = jax.random.uniform(kb, (1, fan_out), jnp.float32, -bound, bound)
        return w, b

    w1, b1 = linear(ks[0], ks[1], input_size, h0)
    w2, b2 = linear(ks[2], ks[3], h0, h1)
    w3, b3 = linear(ks[4], ks[5], h1, output_size)
    return dict(
        w1=w1, b1=b1, g1=jnp.ones((1, h0), jnp.float32), be1=jnp.zeros((1, h0), jnp.float32),
        w2=w2, b2=b2, g2=jnp.ones((1, h1), jnp.float32), be2=jnp.zeros((1, h1), jnp.float32),
        w3=w3, b3=b3,
    )


def reference_forward(x, p):
    def ln(h, g, b):
        mu = jnp.mean(h, axis=-1, keepdims=True)
        var = jnp.mean((h - mu) ** 2, axis=-1, keepdims=True)
        return (h - mu) / jnp.sqrt(var + LN_EPS) * g + b
    h = jnp.maximum(ln(x @ p["w1"] + p["b1"], p["g1"], p["be1"]), 0.0)
    h = jnp.maximum(ln(h @ p["w2"] + p["b2"], p["g2"], p["be2"]), 0.0)
    return h @ p["w3"] + p["b3"]


if __name__ == "__main__":
    key = jax.random.PRNGKey(0)
    k_x, k_p, k_x2 = jax.random.split(key, 3)

    input_size = 24     # e.g. concat of two states for inverse dynamics
    output_size = 7     # e.g. action dim

    params = init_params(k_p, input_size, output_size)
    prepared = prepare_params(params)

    # Small-batch check (tile caps to 8 rows -> grid of 2, exercises megacore split path).
    batch = 16
    x = jax.random.normal(k_x, (batch, input_size), jnp.float32)
    out = jax.block_until_ready(inverse_dynamics_forward(x, prepared))
    ref = reference_forward(x, params)
    assert out.shape == (batch, output_size)
    assert jnp.allclose(out, ref, atol=5e-2, rtol=5e-2), "mismatch vs reference (small batch)"

    # Multi-tile check: batch not a multiple of the row tile exercises row padding + grid>2.
    batch2 = 272
    x2 = jax.random.normal(k_x2, (batch2, input_size), jnp.float32)
    out2 = jax.block_until_ready(inverse_dynamics_forward(x2, prepared))
    ref2 = reference_forward(x2, params)
    assert out2.shape == (batch2, output_size)
    assert jnp.allclose(out2, ref2, atol=5e-2, rtol=5e-2), "mismatch vs reference (tiled batch)"

    # NOTE: if this module is called repeatedly at tiny batch (per-step RL loop), the bf16
    # weight DMA (~256 KB) dominates; batch timesteps or keep weights resident across calls.
    # TODO(synk): with_sigmoid=True branch (extra Linear(h1,1)+sigmoid, concat on dim=-1)
    # and outputActivation are omitted since the module defaults leave them disabled.
    print("KERNEL_OK")
</pallas_src>

<mosaic_0001>
module attributes {stable_mosaic.version = 11 : i64} {
  func.func @inverse_dynamics_kernel(%arg0: i32, %arg1: memref<8x24xf32, #tpu.memory_space<vmem>>, %arg2: memref<24x256xbf16, #tpu.memory_space<vmem>>, %arg3: memref<3x256xf32, #tpu.memory_space<vmem>>, %arg4: memref<256x256xbf16, #tpu.memory_space<vmem>>, %arg5: memref<3x256xf32, #tpu.memory_space<vmem>>, %arg6: memref<256x7xbf16, #tpu.memory_space<vmem>>, %arg7: memref<1x7xf32, #tpu.memory_space<vmem>>, %arg8: memref<8x7xf32, #tpu.memory_space<vmem>>) attributes {dimension_semantics = [#tpu.dimension_semantics<parallel>], iteration_bounds = array<i64: 2>, scalar_prefetch = 0 : i64, scratch_operands = 0 : i64, tpu.core_type = #tpu.core_type<tc>, window_params = [{transform_indices = @transform_0, window_bounds = array<i64: 8, 24>}, {pipeline_mode = #tpu.pipeline_mode<synchronous>, transform_indices = @transform_1, window_bounds = array<i64: 24, 256>}, {pipeline_mode = #tpu.pipeline_mode<synchronous>, transform_indices = @transform_2, window_bounds = array<i64: 3, 256>}, {pipeline_mode = #tpu.pipeline_mode<synchronous>, transform_indices = @transform_3, window_bounds = array<i64: 256, 256>}, {pipeline_mode = #tpu.pipeline_mode<synchronous>, transform_indices = @transform_4, window_bounds = array<i64: 3, 256>}, {pipeline_mode = #tpu.pipeline_mode<synchronous>, transform_indices = @transform_5, window_bounds = array<i64: 256, 7>}, {pipeline_mode = #tpu.pipeline_mode<synchronous>, transform_indices = @transform_6, window_bounds = array<i64: 1, 7>}, {transform_indices = @transform_7, window_bounds = array<i64: 8, 7>}]} {
    %c0 = arith.constant 0 : index
    %c0_0 = arith.constant 0 : index
    %0 = vector.load %arg1[%c0, %c0_0] : memref<8x24xf32, #tpu.memory_space<vmem>>, vector<8x24xf32>
    %1 = arith.truncf %0 : vector<8x24xf32> to vector<8x24xbf16>
    %c0_1 = arith.constant 0 : index
    %c0_2 = arith.constant 0 : index
    %2 = vector.load %arg3[%c0_1, %c0_2] : memref<3x256xf32, #tpu.memory_space<vmem>>, vector<3x256xf32>
    %c0_3 = arith.constant 0 : index
    %c0_4 = arith.constant 0 : index
    %3 = vector.load %arg2[%c0_3, %c0_4] : memref<24x256xbf16, #tpu.memory_space<vmem>>, vector<24x256xbf16>
    %cst = arith.constant dense<0.000000e+00> : vector<8x256xf32>
    %4 = tpu.matmul %1, %3, %cst {dimension_numbers = #tpu.dot_dimension_numbers<[1], [0], [0], [1], [0, 0, 1, 1], [], []>} : vector<8x24xbf16>, vector<24x256xbf16>, vector<8x256xf32> -> vector<8x256xf32>
    %5 = vector.extract_strided_slice %2 {offsets = [0, 0], sizes = [1, 256], strides = [1, 1]} : vector<3x256xf32> to vector<1x256xf32>
    %6 = vector.broadcast %5 : vector<1x256xf32> to vector<8x256xf32>
    %7 = arith.addf %4, %6 : vector<8x256xf32>
    %8 = vector.extract_strided_slice %2 {offsets = [1, 0], sizes = [1, 256], strides = [1, 1]} : vector<3x256xf32> to vector<1x256xf32>
    %9 = vector.extract_strided_slice %2 {offsets = [2, 0], sizes = [1, 256], strides = [1, 1]} : vector<3x256xf32> to vector<1x256xf32>
    %cst_5 = arith.constant dense<0.000000e+00> : vector<8xf32>
    %10 = vector.multi_reduction <add>, %7, %cst_5 [1] : vector<8x256xf32> to vector<8xf32>
    %11 = vector.shape_cast %10 : vector<8xf32> to vector<8x1xf32>
    %cst_6 = arith.constant 2.560000e+02 : f32
    %12 = vector.broadcast %cst_6 : f32 to vector<8x1xf32>
    %13 = arith.divf %11, %12 : vector<8x1xf32>
    %14 = vector.broadcast %13 : vector<8x1xf32> to vector<8x256xf32>
    %15 = arith.subf %7, %14 : vector<8x256xf32>
    %16 = arith.mulf %15, %15 : vector<8x256xf32>
    %cst_7 = arith.constant dense<0.000000e+00> : vector<8xf32>
    %17 = vector.multi_reduction <add>, %16, %cst_7 [1] : vector<8x256xf32> to vector<8xf32>
    %18 = vector.shape_cast %17 : vector<8xf32> to vector<8x1xf32>
    %cst_8 = arith.constant 2.560000e+02 : f32
    %19 = vector.broadcast %cst_8 : f32 to vector<8x1xf32>
    %20 = arith.divf %18, %19 : vector<8x1xf32>
    %cst_9 = arith.constant 9.99999974E-6 : f32
    %21 = vector.broadcast %cst_9 : f32 to vector<8x1xf32>
    %22 = arith.addf %20, %21 : vector<8x1xf32>
    %23 = math.rsqrt %22 : vector<8x1xf32>
    %24 = vector.broadcast %23 : vector<8x1xf32> to vector<8x256xf32>
    %25 = arith.mulf %15, %24 : vector<8x256xf32>
    %26 = vector.broadcast %8 : vector<1x256xf32> to vector<8x256xf32>
    %27 = arith.mulf %25, %26 : vector<8x256xf32>
    %28 = vector.broadcast %9 : vector<1x256xf32> to vector<8x256xf32>
    %29 = arith.addf %27, %28 : vector<8x256xf32>
    %cst_10 = arith.constant 0.000000e+00 : f32
    %30 = vector.broadcast %cst_10 : f32 to vector<8x256xf32>
    %31 = arith.maximumf %29, %30 : vector<8x256xf32>
    %c0_11 = arith.constant 0 : index
    %c0_12 = arith.constant 0 : index
    %32 = vector.load %arg5[%c0_11, %c0_12] : memref<3x256xf32, #tpu.memory_space<vmem>>, vector<3x256xf32>
    %33 = arith.truncf %31 : vector<8x256xf32> to vector<8x256xbf16>
    %c0_13 = arith.constant 0 : index
    %c0_14 = arith.constant 0 : index
    %34 = vector.load %arg4[%c0_13, %c0_14] : memref<256x256xbf16, #tpu.memory_space<vmem>>, vector<256x256xbf16>
    %cst_15 = arith.constant dense<0.000000e+00> : vector<8x256xf32>
    %35 = tpu.matmul %33, %34, %cst_15 {dimension_numbers = #tpu.dot_dimension_numbers<[1], [0], [0], [1], [0, 0, 1, 1], [], []>} : vector<8x256xbf16>, vector<256x256xbf16>, vector<8x256xf32> -> vector<8x256xf32>
    %36 = vector.extract_strided_slice %32 {offsets = [0, 0], sizes = [1, 256], strides = [1, 1]} : vector<3x256xf32> to vector<1x256xf32>
    %37 = vector.broadcast %36 : vector<1x256xf32> to vector<8x256xf32>
    %38 = arith.addf %35, %37 : vector<8x256xf32>
    %39 = vector.extract_strided_slice %32 {offsets = [1, 0], sizes = [1, 256], strides = [1, 1]} : vector<3x256xf32> to vector<1x256xf32>
    %40 = vector.extract_strided_slice %32 {offsets = [2, 0], sizes = [1, 256], strides = [1, 1]} : vector<3x256xf32> to vector<1x256xf32>
    %cst_16 = arith.constant dense<0.000000e+00> : vector<8xf32>
    %41 = vector.multi_reduction <add>, %38, %cst_16 [1] : vector<8x256xf32> to vector<8xf32>
    %42 = vector.shape_cast %41 : vector<8xf32> to vector<8x1xf32>
    %cst_17 = arith.constant 2.560000e+02 : f32
    %43 = vector.broadcast %cst_17 : f32 to vector<8x1xf32>
    %44 = arith.divf %42, %43 : vector<8x1xf32>
    %45 = vector.broadcast %44 : vector<8x1xf32> to vector<8x256xf32>
    %46 = arith.subf %38, %45 : vector<8x256xf32>
    %47 = arith.mulf %46, %46 : vector<8x256xf32>
    %cst_18 = arith.constant dense<0.000000e+00> : vector<8xf32>
    %48 = vector.multi_reduction <add>, %47, %cst_18 [1] : vector<8x256xf32> to vector<8xf32>
    %49 = vector.shape_cast %48 : vector<8xf32> to vector<8x1xf32>
    %cst_19 = arith.constant 2.560000e+02 : f32
    %50 = vector.broadcast %cst_19 : f32 to vector<8x1xf32>
    %51 = arith.divf %49, %50 : vector<8x1xf32>
    %cst_20 = arith.constant 9.99999974E-6 : f32
    %52 = vector.broadcast %cst_20 : f32 to vector<8x1xf32>
    %53 = arith.addf %51, %52 : vector<8x1xf32>
    %54 = math.rsqrt %53 : vector<8x1xf32>
    %55 = vector.broadcast %54 : vector<8x1xf32> to vector<8x256xf32>
    %56 = arith.mulf %46, %55 : vector<8x256xf32>
    %57 = vector.broadcast %39 : vector<1x256xf32> to vector<8x256xf32>
    %58 = arith.mulf %56, %57 : vector<8x256xf32>
    %59 = vector.broadcast %40 : vector<1x256xf32> to vector<8x256xf32>
    %60 = arith.addf %58, %59 : vector<8x256xf32>
    %cst_21 = arith.constant 0.000000e+00 : f32
    %61 = vector.broadcast %cst_21 : f32 to vector<8x256xf32>
    %62 = arith.maximumf %60, %61 : vector<8x256xf32>
    %63 = arith.truncf %62 : vector<8x256xf32> to vector<8x256xbf16>
    %c0_22 = arith.constant 0 : index
    %c0_23 = arith.constant 0 : index
    %64 = vector.load %arg6[%c0_22, %c0_23] : memref<256x7xbf16, #tpu.memory_space<vmem>>, vector<256x7xbf16>
    %cst_24 = arith.constant dense<0.000000e+00> : vector<8x7xf32>
    %65 = tpu.matmul %63, %64, %cst_24 {dimension_numbers = #tpu.dot_dimension_numbers<[1], [0], [0], [1], [0, 0, 1, 1], [], []>} : vector<8x256xbf16>, vector<256x7xbf16>, vector<8x7xf32> -> vector<8x7xf32>
    %c0_25 = arith.constant 0 : index
    %c0_26 = arith.constant 0 : index
    %66 = vector.load %arg7[%c0_25, %c0_26] : memref<1x7xf32, #tpu.memory_space<vmem>>, vector<1x7xf32>
    %67 = vector.broadcast %66 : vector<1x7xf32> to vector<8x7xf32>
    %68 = arith.addf %65, %67 : vector<8x7xf32>
    %c0_27 = arith.constant 0 : index
    %c0_28 = arith.constant 0 : index
    %69 = vector.load %arg8[%c0_27, %c0_28] : memref<8x7xf32, #tpu.memory_space<vmem>>, vector<8x7xf32>
    tpu.vector_store %arg8[%c0_27, %c0_28], %68 {strides = array<i32>} : memref<8x7xf32, #tpu.memory_space<vmem>>, vector<8x7xf32>,
    return
  }
  func.func @transform_0(%arg0: i32) -> (i32, i32) {
    %c0_i32 = arith.constant 0 : i32
    %c0_i32_0 = arith.constant 0 : i32
    return %arg0, %c0_i32 : i32, i32
  }
  func.func @transform_1(%arg0: i32) -> (i32, i32) {
    %c0_i32 = arith.constant 0 : i32
    %c0_i32_0 = arith.constant 0 : i32
    %c0_i32_1 = arith.constant 0 : i32
    return %c0_i32, %c0_i32_0 : i32, i32
  }
  func.func @transform_2(%arg0: i32) -> (i32, i32) {
    %c0_i32 = arith.constant 0 : i32
    %c0_i32_0 = arith.constant 0 : i32
    %c0_i32_1 = arith.constant 0 : i32
    return %c0_i32, %c0_i32_0 : i32, i32
  }
  func.func @transform_3(%arg0: i32) -> (i32, i32) {
    %c0_i32 = arith.constant 0 : i32
    %c0_i32_0 = arith.constant 0 : i32
    %c0_i32_1 = arith.constant 0 : i32
    return %c0_i32, %c0_i32_0 : i32, i32
  }
  func.func @transform_4(%arg0: i32) -> (i32, i32) {
    %c0_i32 = arith.constant 0 : i32
    %c0_i32_0 = arith.constant 0 : i32
    %c0_i32_1 = arith.constant 0 : i32
    return %c0_i32, %c0_i32_0 : i32, i32
  }
  func.func @transform_5(%arg0: i32) -> (i32, i32) {
    %c0_i32 = arith.constant 0 : i32
    %c0_i32_0 = arith.constant 0 : i32
    %c0_i32_1 = arith.constant 0 : i32
    return %c0_i32, %c0_i32_0 : i32, i32
  }
  func.func @transform_6(%arg0: i32) -> (i32, i32) {
    %c0_i32 = arith.constant 0 : i32
    %c0_i32_0 = arith.constant 0 : i32
    %c0_i32_1 = arith.constant 0 : i32
    return %c0_i32, %c0_i32_0 : i32, i32
  }
  func.func @transform_7(%arg0: i32) -> (i32, i32) {
    %c0_i32 = arith.constant 0 : i32
    %c0_i32_0 = arith.constant 0 : i32
    return %arg0, %c0_i32 : i32, i32
  }
}

</mosaic_0001>

<llo_original>
// kernel: tpu_custom_call.1
$region0: #{tpu_custom_call.1}
  #allocation0 [shape = 'u32[]', space=smem, size = 0x4, offset = 0x4, fixed_abs, tag = 'smem constant byte address 0x4 - core index']
  #allocation1 [shape = 'u32[144,128]{1,0:T(1,128)}', space=vmem, size = 0x12000, scoped, tag = 'internal scratch']
  %s0 = inlined_call_operand.vmem [shape: f32[16,24], index: 0, kind: input, shape index: {}]
  %s1 = inlined_call_operand.vmem [shape: bf16[24,256], index: 1, kind: input, shape index: {}]
  %s2 = inlined_call_operand.vmem [shape: f32[3,256], index: 2, kind: input, shape index: {}]
  %s3 = inlined_call_operand.hbm [shape: bf16[256,256], index: 3, kind: input, shape index: {}]
  %s4 = inlined_call_operand.vmem [shape: f32[3,256], index: 4, kind: input, shape index: {}]
  %s5 = inlined_call_operand.vmem [shape: bf16[256,7], index: 5, kind: input, shape index: {}]
  %s6 = inlined_call_operand.vmem [shape: f32[1,7], index: 6, kind: input, shape index: {}]
  %s7 = inlined_call_operand.vmem [shape: f32[16,7], index: 7, kind: output, shape index: {}]
  %s8 = sld [smem:[#allocation0]]
  $region65: #{tpu_custom_call.1} parent=0
    _
  %s10 = ssub.s32 1, %s8
  %s11 = scalar_select 0, %s10, %s8
  $region1: #{tpu_custom_call.1} parent=0
    #allocation2 [shape = 'u8[131072]{0}', space=vmem, size = 0x20000, scoped, tag = 'input window, operand 3, single buffered']
    #allocation3 [shape = 's32[2]{0}', space=sflag, size = 0x8, scoped, tag = 'scoped memory for tpu_custom_call.1']
    %12 = vsyncpa [#allocation3], 0
    loop: start=0, step=1, limit=4
    $region2: #{tpu_custom_call.1} parent=1 // loop_pre_header
      _
    $region3: #{tpu_custom_call.1} parent=1 // loop_header
      %s14 = sphi 0, %s18
      %p15 = scmp.ge.s32.totalorder %s14, 4
      %s24 = sphi 0, %s26
      %s27 = sphi 0, %s24
      %s28 = sphi 0, %s27
      %s44 = sphi 0, %s28
      %s48 = sphi 0, %s48
      %s50 = sphi 0, %s48
      %s51 = sphi 0, %s50
      %s65 = sphi 0, %s51
      %s69 = sphi 0, %s69
      %s71 = sphi 0, %s69
      %s72 = sphi 0, %s71
      %s86 = sphi 0, %s72
      %s90 = sphi 0, %s90
      %s92 = sphi 0, %s90
      %s93 = sphi 0, %s92
      %s107 = sphi 0, %s93
      %s111 = sphi 0, %s111
      %s113 = sphi 0, %s111
      %s114 = sphi 0, %s113
      %s128 = sphi 0, %s114
      %s132 = sphi 0, %s132
      %s134 = sphi 0, %s132
      %s135 = sphi 0, %s134
      %s149 = sphi 0, %s135
      %s153 = sphi 0, %s153
      %s155 = sphi 0, %s153
      %s156 = sphi 0, %s155
      %s170 = sphi 0, %s156
      %s176 = sphi 0, %s178
      %s179 = sphi 0, %s176
      %s180 = sphi 0, %s179
      %s196 = sphi 0, %s180
    $region4: #{tpu_custom_call.1} parent=1 // loop_header_branch
      %17 = sbr.rel (%p15) target = $region8
    $region5: #{tpu_custom_call.1} parent=1 // loop_body
      %s19 = ssub.s32 %s14, 1
      %s20 = ssub.s32 %s14, 2
      %s21 = sadd.s32 %s14, 1
      %s22 = ssub.s32 %s14, %s21
      %p23 = scmp.eq.s32.totalorder %s22, 0
      %s25 = sadd.s32 %s24, 1
      %s26 = scalar_select %p23, %s24, %s25
      %p29 = pneg %p23
      %p30 = scmp.eq.s32.totalorder %s14, 1
      %p31 = por %p29, %p30
      %p32 = scmp.ne.s32.totalorder %s24, %s27
      %p33 = scmp.eq.s32.totalorder %s14, 0
      %p34 = por %p32, %p33
      %p35 = scmp.ne.s32.totalorder %s24, %s27
      %p36 = scmp.eq.s32.totalorder %s19, 1
      %p37 = por %p35, %p36
      %p38 = scmp.ne.s32.totalorder %s27, %s28
      %p39 = scmp.eq.s32.totalorder %s19, 0
      %p40 = por %p38, %p39
      %p41 = scmp.ne.s32.totalorder %s27, %s28
      %p42 = scmp.eq.s32.totalorder %s20, 1
      %p43 = por %p41, %p42
      %p45 = scmp.ne.s32.totalorder %s28, %s44
      %p46 = scmp.eq.s32.totalorder %s20, 0
      %p47 = por %p45, %p46
      %s49 = sadd.s32 %s48, 1
      %p52 = scmp.eq.s32.totalorder %s14, 1
      %p53 = scmp.ne.s32.totalorder %s48, %s50
      %p54 = scmp.eq.s32.totalorder %s14, 0
      %p55 = por %p53, %p54
      %p56 = scmp.ne.s32.totalorder %s48, %s50
      %p57 = scmp.eq.s32.totalorder %s19, 1
      %p58 = por %p56, %p57
      %p59 = scmp.ne.s32.totalorder %s50, %s51
      %p60 = scmp.eq.s32.totalorder %s19, 0
      %p61 = por %p59, %p60
      %p62 = scmp.ne.s32.totalorder %s50, %s51
      %p63 = scmp.eq.s32.totalorder %s20, 1
      %p64 = por %p62, %p63
      %p66 = scmp.ne.s32.totalorder %s51, %s65
      %p67 = scmp.eq.s32.totalorder %s20, 0
      %p68 = por %p66, %p67
      %s70 = sadd.s32 %s69, 1
      %p73 = scmp.eq.s32.totalorder %s14, 1
      %p74 = scmp.ne.s32.totalorder %s69, %s71
      %p75 = scmp.eq.s32.totalorder %s14, 0
      %p76 = por %p74, %p75
      %p77 = scmp.ne.s32.totalorder %s69, %s71
      %p78 = scmp.eq.s32.totalorder %s19, 1
      %p79 = por %p77, %p78
      %p80 = scmp.ne.s32.totalorder %s71, %s72
      %p81 = scmp.eq.s32.totalorder %s19, 0
      %p82 = por %p80, %p81
      %p83 = scmp.ne.s32.totalorder %s71, %s72
      %p84 = scmp.eq.s32.totalorder %s20, 1
      %p85 = por %p83, %p84
      %p87 = scmp.ne.s32.totalorder %s72, %s86
      %p88 = scmp.eq.s32.totalorder %s20, 0
      %p89 = por %p87, %p88
      %s91 = sadd.s32 %s90, 1
      %p94 = scmp.eq.s32.totalorder %s14, 1
      %p95 = scmp.ne.s32.totalorder %s90, %s92
      %p96 = scmp.eq.s32.totalorder %s14, 0
      %p97 = por %p95, %p96
      %p98 = scmp.ne.s32.totalorder %s90, %s92
      %p99 = scmp.eq.s32.totalorder %s19, 1
      %p100 = por %p98, %p99
      %p101 = scmp.ne.s32.totalorder %s92, %s93
      %p102 = scmp.eq.s32.totalorder %s19, 0
      %p103 = por %p101, %p102
      %p104 = scmp.ne.s32.totalorder %s92, %s93
      %p105 = scmp.eq.s32.totalorder %s20, 1
      %p106 = por %p104, %p105
      %p108 = scmp.ne.s32.totalorder %s93, %s107
      %p109 = scmp.eq.s32.totalorder %s20, 0
      %p110 = por %p108, %p109
      %s112 = sadd.s32 %s111, 1
      %p115 = scmp.eq.s32.totalorder %s14, 1
      %p116 = scmp.ne.s32.totalorder %s111, %s113
      %p117 = scmp.eq.s32.totalorder %s14, 0
      %p118 = por %p116, %p117
      %p119 = scmp.ne.s32.totalorder %s111, %s113
      %p120 = scmp.eq.s32.totalorder %s19, 1
      %p121 = por %p119, %p120
      %p122 = scmp.ne.s32.totalorder %s113, %s114
      %p123 = scmp.eq.s32.totalorder %s19, 0
      %p124 = por %p122, %p123
      %p125 = scmp.ne.s32.totalorder %s113, %s114
      %p126 = scmp.eq.s32.totalorder %s20, 1
      %p127 = por %p125, %p126
      %p129 = scmp.ne.s32.totalorder %s114, %s128
      %p130 = scmp.eq.s32.totalorder %s20, 0
      %p131 = por %p129, %p130
      %s133 = sadd.s32 %s132, 1
      %p136 = scmp.eq.s32.totalorder %s14, 1
      %p137 = scmp.ne.s32.totalorder %s132, %s134
      %p138 = scmp.eq.s32.totalorder %s14, 0
      %p139 = por %p137, %p138
      %p140 = scmp.ne.s32.totalorder %s132, %s134
      %p141 = scmp.eq.s32.totalorder %s19, 1
      %p142 = por %p140, %p141
      %p143 = scmp.ne.s32.totalorder %s134, %s135
      %p144 = scmp.eq.s32.totalorder %s19, 0
      %p145 = por %p143, %p144
      %p146 = scmp.ne.s32.totalorder %s134, %s135
      %p147 = scmp.eq.s32.totalorder %s20, 1
      %p148 = por %p146, %p147
      %p150 = scmp.ne.s32.totalorder %s135, %s149
      %p151 = scmp.eq.s32.totalorder %s20, 0
      %p152 = por %p150, %p151
      %s154 = sadd.s32 %s153, 1
      %p157 = scmp.eq.s32.totalorder %s14, 1
      %p158 = scmp.ne.s32.totalorder %s153, %s155
      %p159 = scmp.eq.s32.totalorder %s14, 0
      %p160 = por %p158, %p159
      %p161 = scmp.ne.s32.totalorder %s153, %s155
      %p162 = scmp.eq.s32.totalorder %s19, 1
      %p163 = por %p161, %p162
      %p164 = scmp.ne.s32.totalorder %s155, %s156
      %p165 = scmp.eq.s32.totalorder %s19, 0
      %p166 = por %p164, %p165
      %p167 = scmp.ne.s32.totalorder %s155, %s156
      %p168 = scmp.eq.s32.totalorder %s20, 1
      %p169 = por %p167, %p168
      %p171 = scmp.ne.s32.totalorder %s156, %s170
      %p172 = scmp.eq.s32.totalorder %s20, 0
      %p173 = por %p171, %p172
      %s174 = ssub.s32 %s14, %s21
      %p175 = scmp.eq.s32.totalorder %s174, 0
      %s177 = sadd.s32 %s176, 1
      %s178 = scalar_select %p175, %s176, %s177
      %p181 = pneg %p175
      %p182 = scmp.eq.s32.totalorder %s14, 1
      %p183 = por %p181, %p182
      %p184 = scmp.ne.s32.totalorder %s176, %s179
      %p185 = scmp.eq.s32.totalorder %s14, 0
      %p186 = por %p184, %p185
      %p187 = scmp.ne.s32.totalorder %s176, %s179
      %p188 = scmp.eq.s32.totalorder %s19, 1
      %p189 = por %p187, %p188
      %p190 = scmp.ne.s32.totalorder %s179, %s180
      %p191 = scmp.eq.s32.totalorder %s19, 0
      %p192 = por %p190, %p191
      %p193 = scmp.ne.s32.totalorder %s179, %s180
      %p194 = scmp.eq.s32.totalorder %s20, 1
      %p195 = por %p193, %p194
      %p197 = scmp.ne.s32.totalorder %s180, %s196
      %p198 = scmp.eq.s32.totalorder %s20, 0
      %p199 = por %p197, %p198
      %p200 = scmp.le.s32.totalorder 1, %s14
      %p201 = scmp.lt.s32.totalorder %s14, 3
      %p202 = pnand %p200, %p201
      %p203 = pneg %p202
      // Predicated region
      $region9: #{tpu_custom_call.1} parent=5 // pred_check
        _
      $region10: #{tpu_custom_call.1} parent=5 // pred_check_branch
        %205 = sbr.rel (%p202) target = $region12
      $region11: #{tpu_custom_call.1} parent=5 // pred_region
        %s206 = ssub.s32 %s14, 1
        // Predicated region
        $region13: #{tpu_custom_call.1} parent=11 // pred_check
          %p207 = pneg %p61
        $region14: #{tpu_custom_call.1} parent=11 // pred_check_branch
          %209 = sbr.rel (%p207) target = $region16
        $region15: #{tpu_custom_call.1} parent=11 // pred_region
          _
        $region16: #{tpu_custom_call.1} parent=11 // pred_fallthru
          _
        // Predicated region
        $region17: #{tpu_custom_call.1} parent=11 // pred_check
          %p210 = pneg %p82
        $region18: #{tpu_custom_call.1} parent=11 // pred_check_branch
          %212 = sbr.rel (%p210) target = $region20
        $region19: #{tpu_custom_call.1} parent=11 // pred_region
          _
        $region20: #{tpu_custom_call.1} parent=11 // pred_fallthru
          _
        // Predicated region
        $region21: #{tpu_custom_call.1} parent=11 // pred_check
          %p213 = pneg %p103
        $region22: #{tpu_custom_call.1} parent=11 // pred_check_branch
          %215 = sbr.rel (%p213) target = $region24
        $region23: #{tpu_custom_call.1} parent=11 // pred_region
          %s217 = ssub.s32 4096, 4096
          %218 = vsyncadd [#allocation3], %s217
          %s219 = sshll.u32 [#allocation2], 4
          %s220 = int_to_ptr.vmem [resolvable:$true] %s219
          %225 = dma.hbm_to_vmem [thread:$0]  %s3, 4096, %s220, [#allocation3], 128, 128, 8
        $region24: #{tpu_custom_call.1} parent=11 // pred_fallthru
          _
        // Predicated region
        $region25: #{tpu_custom_call.1} parent=11 // pred_check
          %p226 = pneg %p124
        $region26: #{tpu_custom_call.1} parent=11 // pred_check_branch
          %228 = sbr.rel (%p226) target = $region28
        $region27: #{tpu_custom_call.1} parent=11 // pred_region
          _
        $region28: #{tpu_custom_call.1} parent=11 // pred_fallthru
          _
        // Predicated region
        $region29: #{tpu_custom_call.1} parent=11 // pred_check
          %p229 = pneg %p145
        $region30: #{tpu_custom_call.1} parent=11 // pred_check_branch
          %231 = sbr.rel (%p229) target = $region32
        $region31: #{tpu_custom_call.1} parent=11 // pred_region
          _
        $region32: #{tpu_custom_call.1} parent=11 // pred_fallthru
          _
        // Predicated region
        $region33: #{tpu_custom_call.1} parent=11 // pred_check
          %p232 = pneg %p166
        $region34: #{tpu_custom_call.1} parent=11 // pred_check_branch
          %234 = sbr.rel (%p232) target = $region36
        $region35: #{tpu_custom_call.1} parent=11 // pred_region
          _
        $region36: #{tpu_custom_call.1} parent=11 // pred_fallthru
          _
      $region12: #{tpu_custom_call.1} parent=5 // pred_fallthru
        _
      %p235 = scmp.lt.s32.totalorder %s14, 2
      // Predicated region
      $region37: #{tpu_custom_call.1} parent=5 // pred_check
        %p236 = pneg %p235
      $region38: #{tpu_custom_call.1} parent=5 // pred_check_branch
        %238 = sbr.rel (%p236) target = $region40
      $region39: #{tpu_custom_call.1} parent=5 // pred_region
        // Predicated region
        $region41: #{tpu_custom_call.1} parent=39 // pred_check
          %p239 = pneg %p34
        $region42: #{tpu_custom_call.1} parent=39 // pred_check_branch
          %241 = sbr.rel (%p239) target = $region44
        $region43: #{tpu_custom_call.1} parent=39 // pred_region
          %p242 = scmp.lt.s32.totalorder %s14, 1
          %s243 = scalar_select %p242, %s14, 1
          %s244 = smul.addr %s243, 8
          %s245 = scalar_lea.vmem %s0, %s244
        $region44: #{tpu_custom_call.1} parent=39 // pred_fallthru
          _
      $region40: #{tpu_custom_call.1} parent=5 // pred_fallthru
        _
      %p246 = scmp.le.s32.totalorder 1, %s14
      %p247 = scmp.lt.s32.totalorder %s14, 3
      %p248 = pnand %p246, %p247
      %p249 = pneg %p248
      // Predicated region
      $region45: #{tpu_custom_call.1} parent=5 // pred_check
        _
      $region46: #{tpu_custom_call.1} parent=5 // pred_check_branch
        %251 = sbr.rel (%p248) target = $region48
      $region47: #{tpu_custom_call.1} parent=5 // pred_region
        %s252 = ssub.s32 %s14, 1
        // Predicated region
        $region49: #{tpu_custom_call.1} parent=47 // pred_check
          %p253 = pneg %p103
        $region50: #{tpu_custom_call.1} parent=47 // pred_check_branch
          %255 = sbr.rel (%p253) target = $region52
        $region51: #{tpu_custom_call.1} parent=47 // pred_region
          %256 = dma.done [#allocation3], 4096
        $region52: #{tpu_custom_call.1} parent=47 // pred_fallthru
          _
        %p257 = scmp.lt.s32.totalorder %s19, 1
        %s258 = scalar_select %p257, %s19, 1
        %s259 = smul.addr %s258, 8
        %s260 = scalar_lea.vmem %s0, %s259
        %p261 = pneg %p40
        %p262 = pneg %p37
        %p263 = pneg %p61
        %p264 = pneg %p58
        %p265 = pneg %p82
        %p266 = pneg %p79
        %p267 = pneg %p103
        %p268 = pneg %p100
        %p269 = pneg %p124
        %p270 = pneg %p121
        %p271 = pneg %p145
        %p272 = pneg %p142
        %p273 = pneg %p166
        %p274 = pneg %p163
        %p275 = pneg %p192
        %p276 = pneg %p189
        %p277 = scmp.lt.s32.totalorder %s19, 1
        %s278 = scalar_select %p277, %s19, 1
        %s279 = smul.addr %s278, 8
        %s280 = scalar_lea.vmem %s7, %s279
        %p281 = scmp.lt.s32.totalorder %s19, 1
        %s282 = scalar_select %p281, %s19, 1
        %s283 = smul.addr %s282, 8
        %s284 = scalar_lea.vmem %s0, %s283
        %p285 = scmp.lt.s32.totalorder %s19, 1
        %s286 = scalar_select %p285, %s19, 1
        %s287 = smul.addr %s286, 8
        %s288 = scalar_lea.vmem %s7, %s287
        %v290 = vld [vmem:[%s284] sm:$0xff]
        %v291 = vpack.c.bf16 %v290, %v290
        %v292 = vld [vmem:[%s2] sm:$0x77]
        %v293 = vld [vmem:[%s1] sm:$0xff]
        %v294 = vld [vmem:[%s1 + $0x8] sm:$0xff]
        %v295 = vld [vmem:[%s1 + $0x10] sm:$0xff]
        %v297 = vlaneseq
        %v298 = vshrl.u32 %v297, 7
        %v299 = vsub.s32 0, %v298
        %v300 = vrot.slane %v292, %v299
        %v301 = vlaneseq
        %v302 = vshrl.u32 %v301, 7
        %v303 = vsub.s32 4, %v302
        %v304 = vrot.slane %v292, %v303
        %v307 = vlaneseq
        %v308 = vshrl.u32 %v307, 7
        %v309 = vsub.s32 0, %v308
        %v310 = vrot.slane %v300, %v309
        %v311 = vlaneseq
        %v312 = vshrl.u32 %v311, 7
        %v313 = vsub.s32 0, %v312
        %v314 = vrot.slane %v304, %v313
        %v318 = vunpack.c.l.b16 %v293
        %v319 = vunpack.c.h.b16 %v293
        %v320 = vunpack.c.l.b16 %v294
        %v321 = vunpack.c.h.b16 %v294
        %v322 = vunpack.c.l.b16 %v295
        %v323 = vunpack.c.h.b16 %v295
        %v324 = vpack.c.b16 %v320, %v318
        %v325 = vpack.c.b16 %v321, %v319
        %v326 = vpack.c.b16 %v322, %v322
        %v327 = vpack.c.b16 %v323, %v323
        %vm330 = vcmask 195584
        %v332 = vsel %vm330, %v291, 0
        %vm334 = vcmask 1043456
        %v336 = vsel %vm334, %v326, 0
        %v339 = vsel %vm334, %v327, 0
        %341 = vmatprep.subr.bf16.mxu0 %v325
        %342 = vmatpush1.bf16.msra.mxu0 %v324
        %343 = vmatprep.subr.bf16.mxu0 %v339
        %344 = vmatpush1.bf16.msra.mxu0 %v336
        %345 = vmatprep.subr.bf16.mxu0 0
        %346 = vmatpush1.bf16.msra.mxu0 0
        %347 = vmatprep.subr.bf16.mxu0 0
        %348 = vmatpush1.bf16.msra.mxu0 0
        %349 = vmatprep.subr.bf16.mxu0 0
        %350 = vmatpush1.bf16.msra.mxu0 0
        %351 = vmatprep.subr.bf16.mxu0 0
        %352 = vmatpush1.bf16.msra.mxu0 0
        %353 = vmatprep.subr.bf16.mxu0 0
        %354 = vmatpush1.bf16.msra.mxu0 0
        %355 = vmatprep.subr.bf16.mxu0 0
        %356 = vmatpush1.bf16.msra.mxu0 0
        %357 = vmatprep.subr.bf16.mxu0 0
        %358 = vmatpush1.bf16.msra.mxu0 0
        %359 = vmatprep.subr.bf16.mxu0 0
        %360 = vmatpush1.bf16.msra.mxu0 0
        %361 = vmatprep.subr.bf16.mxu0 0
        %362 = vmatpush1.bf16.msra.mxu0 0
        %363 = vmatprep.subr.bf16.mxu0 0
        %364 = vmatpush1.bf16.msra.mxu0 0
        %365 = vmatprep.subr.bf16.mxu0 0
        %366 = vmatpush1.bf16.msra.mxu0 0
        %367 = vmatprep.subr.bf16.mxu0 0
        %368 = vmatpush1.bf16.msra.mxu0 0
        %369 = vmatprep.subr.bf16.mxu0 0
        %370 = vmatpush1.bf16.msra.mxu0 0
        %371 = vmatprep.subr.bf16.mxu0 0
        %372 = vmatpush1.bf16.msra.mxu0 0
        %373 = vmatprep.mubr.bf16.mxu0 0
        %374 = vmatmul.mubr.bf16.gmra.mrb[0].mxu0 %v332
        %v375 = vpop.f32.mrb[0].mxu0
        %v376 = vadd.f32 %v310, %v375
        %v377 = vpop.f32.mrb[0].mxu0
        %v378 = vadd.f32 %v314, %v377
        %v379 = vpop.f32.mrb[0].mxu0
        %v380 = vpop.f32.mrb[0].mxu0
        %381 = vdwg.mxu0
        %v382 = vadd.f32 %v376, %v378
        %383 = vadd.xlane.f32.xlu0 %v382
        %v384 = vpop.xlane.xlu0 %383
        %v385 = vrcp.pop 256.0
        %v386 = vmul.f32 %v384, %v385
        %v387 = vsub.f32 %v376, %v386
        %v388 = vsub.f32 %v378, %v386
        %v389 = vmul.f32 %v387, %v387
        %v390 = vmul.f32 %v388, %v388
        %v391 = vadd.f32 %v389, %v390
        %392 = vadd.xlane.f32.xlu0 %v391
        %v393 = vpop.xlane.xlu0 %392
        %v394 = vmul.f32 %v393, %v385
        %v395 = vadd.f32 %v394, 1e-05
        %v396 = vrsqrt.pop %v395
        %v397 = vmul.f32 %v387, %v396
        %v398 = vmul.f32 %v388, %v396
        %v399 = vlaneseq
        %v400 = vshrl.u32 %v399, 7
        %v401 = vsub.s32 1, %v400
        %v402 = vrot.slane %v292, %v401
        %v403 = vlaneseq
        %v404 = vshrl.u32 %v403, 7
        %v405 = vsub.s32 5, %v404
        %v406 = vrot.slane %v292, %v405
        %v409 = vlaneseq
        %v410 = vshrl.u32 %v409, 7
        %v411 = vsub.s32 1, %v410
        %v412 = vrot.slane %v402, %v411
        %v413 = vlaneseq
        %v414 = vshrl.u32 %v413, 7
        %v415 = vsub.s32 1, %v414
        %v416 = vrot.slane %v406, %v415
        %v417 = vmul.f32 %v397, %v412
        %v418 = vmul.f32 %v398, %v416
        %v419 = vlaneseq
        %v420 = vshrl.u32 %v419, 7
        %v421 = vsub.s32 2, %v420
        %v422 = vrot.slane %v292, %v421
        %v423 = vlaneseq
        %v424 = vshrl.u32 %v423, 7
        %v425 = vsub.s32 6, %v424
        %v426 = vrot.slane %v292, %v425
        %v429 = vlaneseq
        %v430 = vshrl.u32 %v429, 7
        %v431 = vsub.s32 2, %v430
        %v432 = vrot.slane %v422, %v431
        %v433 = vlaneseq
        %v434 = vshrl.u32 %v433, 7
        %v435 = vsub.s32 2, %v434
        %v436 = vrot.slane %v426, %v435
        %v437 = vadd.f32 %v417, %v432
        %v438 = vadd.f32 %v418, %v436
        %v439 = vmax.f32 %v437, 0.0
        %v440 = vmax.f32 %v438, 0.0
        %v441 = vld [vmem:[%s4] sm:$0x77]
        %v442 = vpack.c.bf16 %v439, %v439
        %v443 = vpack.c.bf16 %v440, %v440
        %v444 = vld [vmem:[#allocation2] sm:$0xff]
        %v445 = vld [vmem:[#allocation2 + $0x8] sm:$0xff]
        %v446 = vld [vmem:[#allocation2 + $0x10] sm:$0xff]
        %v447 = vld [vmem:[#allocation2 + $0x18] sm:$0xff]
        %v448 = vld [vmem:[#allocation2 + $0x20] sm:$0xff]
        %v449 = vld [vmem:[#allocation2 + $0x28] sm:$0xff]
        %v450 = vld [vmem:[#allocation2 + $0x30] sm:$0xff]
        %v451 = vld [vmem:[#allocation2 + $0x38] sm:$0xff]
        %v452 = vld [vmem:[#allocation2 + $0x40] sm:$0xff]
        %v453 = vld [vmem:[#allocation2 + $0x48] sm:$0xff]
        %v454 = vld [vmem:[#allocation2 + $0x50] sm:$0xff]
        %v455 = vld [vmem:[#allocation2 + $0x58] sm:$0xff]
        %v456 = vld [vmem:[#allocation2 + $0x60] sm:$0xff]
        %v457 = vld [vmem:[#allocation2 + $0x68] sm:$0xff]
        %v458 = vld [vmem:[#allocation2 + $0x70] sm:$0xff]
        %v459 = vld [vmem:[#allocation2 + $0x78] sm:$0xff]
        %v460 = vld [vmem:[#allocation2 + $0x80] sm:$0xff]
        %v461 = vld [vmem:[#allocation2 + $0x88] sm:$0xff]
        %v462 = vld [vmem:[#allocation2 + $0x90] sm:$0xff]
        %v463 = vld [vmem:[#allocation2 + $0x98] sm:$0xff]
        %v464 = vld [vmem:[#allocation2 + $0xa0] sm:$0xff]
        %v465 = vld [vmem:[#allocation2 + $0xa8] sm:$0xff]
        %v466 = vld [vmem:[#allocation2 + $0xb0] sm:$0xff]
        %v467 = vld [vmem:[#allocation2 + $0xb8] sm:$0xff]
        %v468 = vld [vmem:[#allocation2 + $0xc0] sm:$0xff]
        %v469 = vld [vmem:[#allocation2 + $0xc8] sm:$0xff]
        %v470 = vld [vmem:[#allocation2 + $0xd0] sm:$0xff]
        %v471 = vld [vmem:[#allocation2 + $0xd8] sm:$0xff]
        %v472 = vld [vmem:[#allocation2 + $0xe0] sm:$0xff]
        %v473 = vld [vmem:[#allocation2 + $0xe8] sm:$0xff]
        %v474 = vld [vmem:[#allocation2 + $0xf0] sm:$0xff]
        %v475 = vld [vmem:[#allocation2 + $0xf8] sm:$0xff]
        %v477 = vlaneseq
        %v478 = vshrl.u32 %v477, 7
        %v479 = vsub.s32 0, %v478
        %v480 = vrot.slane %v441, %v479
        %v481 = vlaneseq
        %v482 = vshrl.u32 %v481, 7
        %v483 = vsub.s32 4, %v482
        %v484 = vrot.slane %v441, %v483
        %v487 = vlaneseq
        %v488 = vshrl.u32 %v487, 7
        %v489 = vsub.s32 0, %v488
        %v490 = vrot.slane %v480, %v489
        %v491 = vlaneseq
        %v492 = vshrl.u32 %v491, 7
        %v493 = vsub.s32 0, %v492
        %v494 = vrot.slane %v484, %v493
        %v527 = vunpack.c.l.b16 %v444
        %v528 = vunpack.c.h.b16 %v444
        %v529 = vunpack.c.l.b16 %v445
        %v530 = vunpack.c.h.b16 %v445
        %v531 = vunpack.c.l.b16 %v446
        %v532 = vunpack.c.h.b16 %v446
        %v533 = vunpack.c.l.b16 %v447
        %v534 = vunpack.c.h.b16 %v447
        %v535 = vunpack.c.l.b16 %v448
        %v536 = vunpack.c.h.b16 %v448
        %v537 = vunpack.c.l.b16 %v449
        %v538 = vunpack.c.h.b16 %v449
        %v539 = vunpack.c.l.b16 %v450
        %v540 = vunpack.c.h.b16 %v450
        %v541 = vunpack.c.l.b16 %v451
        %v542 = vunpack.c.h.b16 %v451
        %v543 = vunpack.c.l.b16 %v452
        %v544 = vunpack.c.h.b16 %v452
        %v545 = vunpack.c.l.b16 %v453
        %v546 = vunpack.c.h.b16 %v453
        %v547 = vunpack.c.l.b16 %v454
        %v548 = vunpack.c.h.b16 %v454
        %v549 = vunpack.c.l.b16 %v455
        %v550 = vunpack.c.h.b16 %v455
        %v551 = vunpack.c.l.b16 %v456
        %v552 = vunpack.c.h.b16 %v456
        %v553 = vunpack.c.l.b16 %v457
        %v554 = vunpack.c.h.b16 %v457
        %v555 = vunpack.c.l.b16 %v458
        %v556 = vunpack.c.h.b16 %v458
        %v557 = vunpack.c.l.b16 %v459
        %v558 = vunpack.c.h.b16 %v459
        %v559 = vunpack.c.l.b16 %v460
        %v560 = vunpack.c.h.b16 %v460
        %v561 = vunpack.c.l.b16 %v461
        %v562 = vunpack.c.h.b16 %v461
        %v563 = vunpack.c.l.b16 %v462
        %v564 = vunpack.c.h.b16 %v462
        %v565 = vunpack.c.l.b16 %v463
        %v566 = vunpack.c.h.b16 %v463
        %v567 = vunpack.c.l.b16 %v464
        %v568 = vunpack.c.h.b16 %v464
        %v569 = vunpack.c.l.b16 %v465
        %v570 = vunpack.c.h.b16 %v465
        %v571 = vunpack.c.l.b16 %v466
        %v572 = vunpack.c.h.b16 %v466
        %v573 = vunpack.c.l.b16 %v467
        %v574 = vunpack.c.h.b16 %v467
        %v575 = vunpack.c.l.b16 %v468
        %v576 = vunpack.c.h.b16 %v468
        %v577 = vunpack.c.l.b16 %v469
        %v578 = vunpack.c.h.b16 %v469
        %v579 = vunpack.c.l.b16 %v470
        %v580 = vunpack.c.h.b16 %v470
        %v581 = vunpack.c.l.b16 %v471
        %v582 = vunpack.c.h.b16 %v471
        %v583 = vunpack.c.l.b16 %v472
        %v584 = vunpack.c.h.b16 %v472
        %v585 = vunpack.c.l.b16 %v473
        %v586 = vunpack.c.h.b16 %v473
        %v587 = vunpack.c.l.b16 %v474
        %v588 = vunpack.c.h.b16 %v474
        %v589 = vunpack.c.l.b16 %v475
        %v590 = vunpack.c.h.b16 %v475
        %v591 = vpack.c.b16 %v529, %v527
        %v592 = vpack.c.b16 %v530, %v528
        %v593 = vpack.c.b16 %v533, %v531
        %v594 = vpack.c.b16 %v534, %v532
        %v595 = vpack.c.b16 %v537, %v535
        %v596 = vpack.c.b16 %v538, %v536
        %v597 = vpack.c.b16 %v541, %v539
        %v598 = vpack.c.b16 %v542, %v540
        %v599 = vpack.c.b16 %v545, %v543
        %v600 = vpack.c.b16 %v546, %v544
        %v601 = vpack.c.b16 %v549, %v547
        %v602 = vpack.c.b16 %v550, %v548
        %v603 = vpack.c.b16 %v553, %v551
        %v604 = vpack.c.b16 %v554, %v552
        %v605 = vpack.c.b16 %v557, %v555
        %v606 = vpack.c.b16 %v558, %v556
        %v607 = vpack.c.b16 %v561, %v559
        %v608 = vpack.c.b16 %v562, %v560
        %v609 = vpack.c.b16 %v565, %v563
        %v610 = vpack.c.b16 %v566, %v564
        %v611 = vpack.c.b16 %v569, %v567
        %v612 = vpack.c.b16 %v570, %v568
        %v613 = vpack.c.b16 %v573, %v571
        %v614 = vpack.c.b16 %v574, %v572
        %v615 = vpack.c.b16 %v577, %v575
        %v616 = vpack.c.b16 %v578, %v576
        %v617 = vpack.c.b16 %v581, %v579
        %v618 = vpack.c.b16 %v582, %v580
        %v619 = vpack.c.b16 %v585, %v583
        %v620 = vpack.c.b16 %v586, %v584
        %v621 = vpack.c.b16 %v589, %v587
        %v622 = vpack.c.b16 %v590, %v588
        %655 = vmatprep.subr.bf16.mxu0 %v592
        %656 = vmatpush1.bf16.msra.mxu0 %v591
        %657 = vmatprep.subr.bf16.mxu0 %v594
        %658 = vmatpush1.bf16.msra.mxu0 %v593
        %659 = vmatprep.subr.bf16.mxu0 %v596
        %660 = vmatpush1.bf16.msra.mxu0 %v595
        %661 = vmatprep.subr.bf16.mxu0 %v598
        %662 = vmatpush1.bf16.msra.mxu0 %v597
        %663 = vmatprep.subr.bf16.mxu0 %v600
        %664 = vmatpush1.bf16.msra.mxu0 %v599
        %665 = vmatprep.subr.bf16.mxu0 %v602
        %666 = vmatpush1.bf16.msra.mxu0 %v601
        %667 = vmatprep.subr.bf16.mxu0 %v604
        %668 = vmatpush1.bf16.msra.mxu0 %v603
        %669 = vmatprep.subr.bf16.mxu0 %v606
        %670 = vmatpush1.bf16.msra.mxu0 %v605
        %671 = vmatprep.subr.bf16.mxu0 %v608
        %672 = vmatpush1.bf16.msra.mxu0 %v607
        %673 = vmatprep.subr.bf16.mxu0 %v610
        %674 = vmatpush1.bf16.msra.mxu0 %v609
        %675 = vmatprep.subr.bf16.mxu0 %v612
        %676 = vmatpush1.bf16.msra.mxu0 %v611
        %677 = vmatprep.subr.bf16.mxu0 %v614
        %678 = vmatpush1.bf16.msra.mxu0 %v613
        %679 = vmatprep.subr.bf16.mxu0 %v616
        %680 = vmatpush1.bf16.msra.mxu0 %v615
        %681 = vmatprep.subr.bf16.mxu0 %v618
        %682 = vmatpush1.bf16.msra.mxu0 %v617
        %683 = vmatprep.subr.bf16.mxu0 %v620
        %684 = vmatpush1.bf16.msra.mxu0 %v619
        %685 = vmatprep.subr.bf16.mxu0 %v622
        %686 = vmatpush1.bf16.msra.mxu0 %v621
        %687 = vmatprep.mubr.bf16.mxu0 %v443
        %688 = vmatmul.mubr.bf16.gmra.mrb[0].mxu0 %v442
        %v689 = vpop.f32.mrb[0].mxu0
        %v690 = vadd.f32 %v490, %v689
        %v691 = vpop.f32.mrb[0].mxu0
        %v692 = vadd.f32 %v494, %v691
        %v693 = vpop.f32.mrb[0].mxu0
        %v694 = vpop.f32.mrb[0].mxu0
        %695 = vdwg.mxu0
        %v696 = vadd.f32 %v690, %v692
        %697 = vadd.xlane.f32.xlu0 %v696
        %v698 = vpop.xlane.xlu0 %697
        %v699 = vmul.f32 %v698, %v385
        %v700 = vsub.f32 %v690, %v699
        %v701 = vsub.f32 %v692, %v699
        %v702 = vmul.f32 %v700, %v700
        %v703 = vmul.f32 %v701, %v701
        %v704 = vadd.f32 %v702, %v703
        %705 = vadd.xlane.f32.xlu0 %v704
        %v706 = vpop.xlane.xlu0 %705
        %v707 = vmul.f32 %v706, %v385
        %v708 = vadd.f32 %v707, 1e-05
        %v709 = vrsqrt.pop %v708
        %v710 = vmul.f32 %v700, %v709
        %v711 = vmul.f32 %v701, %v709
        %v712 = vlaneseq
        %v713 = vshrl.u32 %v712, 7
        %v714 = vsub.s32 1, %v713
        %v715 = vrot.slane %v441, %v714
        %v716 = vlaneseq
        %v717 = vshrl.u32 %v716, 7
        %v718 = vsub.s32 5, %v717
        %v719 = vrot.slane %v441, %v718
        %v722 = vlaneseq
        %v723 = vshrl.u32 %v722, 7
        %v724 = vsub.s32 1, %v723
        %v725 = vrot.slane %v715, %v724
        %v726 = vlaneseq
        %v727 = vshrl.u32 %v726, 7
        %v728 = vsub.s32 1, %v727
        %v729 = vrot.slane %v719, %v728
        %v730 = vmul.f32 %v710, %v725
        %v731 = vmul.f32 %v711, %v729
        %v732 = vlaneseq
        %v733 = vshrl.u32 %v732, 7
        %v734 = vsub.s32 2, %v733
        %v735 = vrot.slane %v441, %v734
        %v736 = vlaneseq
        %v737 = vshrl.u32 %v736, 7
        %v738 = vsub.s32 6, %v737
        %v739 = vrot.slane %v441, %v738
        %v742 = vlaneseq
        %v743 = vshrl.u32 %v742, 7
        %v744 = vsub.s32 2, %v743
        %v745 = vrot.slane %v735, %v744
        %v746 = vlaneseq
        %v747 = vshrl.u32 %v746, 7
        %v748 = vsub.s32 2, %v747
        %v749 = vrot.slane %v739, %v748
        %v750 = vadd.f32 %v730, %v745
        %v751 = vadd.f32 %v731, %v749
        %v752 = vmax.f32 %v750, 0.0
        %v753 = vmax.f32 %v751, 0.0
        %v754 = vpack.c.bf16 %v752, %v752
        %v755 = vpack.c.bf16 %v753, %v753
        %v756 = vld [vmem:[%s5] sm:$0xf]
        %v757 = vld [vmem:[%s5 + $0x4] sm:$0xf]
        %v758 = vld [vmem:[%s5 + $0x8] sm:$0xf]
        %v759 = vld [vmem:[%s5 + $0xc] sm:$0xf]
        %v760 = vld [vmem:[%s5 + $0x10] sm:$0xf]
        %v761 = vld [vmem:[%s5 + $0x14] sm:$0xf]
        %v762 = vld [vmem:[%s5 + $0x18] sm:$0xf]
        %v763 = vld [vmem:[%s5 + $0x1c] sm:$0xf]
        %v764 = vld [vmem:[%s5 + $0x20] sm:$0xf]
        %v765 = vld [vmem:[%s5 + $0x24] sm:$0xf]
        %v766 = vld [vmem:[%s5 + $0x28] sm:$0xf]
        %v767 = vld [vmem:[%s5 + $0x2c] sm:$0xf]
        %v768 = vld [vmem:[%s5 + $0x30] sm:$0xf]
        %v769 = vld [vmem:[%s5 + $0x34] sm:$0xf]
        %v770 = vld [vmem:[%s5 + $0x38] sm:$0xf]
        %v771 = vld [vmem:[%s5 + $0x3c] sm:$0xf]
        %v772 = vld [vmem:[%s5 + $0x40] sm:$0xf]
        %v773 = vld [vmem:[%s5 + $0x44] sm:$0xf]
        %v774 = vld [vmem:[%s5 + $0x48] sm:$0xf]
        %v775 = vld [vmem:[%s5 + $0x4c] sm:$0xf]
        %v776 = vld [vmem:[%s5 + $0x50] sm:$0xf]
        %v777 = vld [vmem:[%s5 + $0x54] sm:$0xf]
        %v778 = vld [vmem:[%s5 + $0x58] sm:$0xf]
        %v779 = vld [vmem:[%s5 + $0x5c] sm:$0xf]
        %v780 = vld [vmem:[%s5 + $0x60] sm:$0xf]
        %v781 = vld [vmem:[%s5 + $0x64] sm:$0xf]
        %v782 = vld [vmem:[%s5 + $0x68] sm:$0xf]
        %v783 = vld [vmem:[%s5 + $0x6c] sm:$0xf]
        %v784 = vld [vmem:[%s5 + $0x70] sm:$0xf]
        %v785 = vld [vmem:[%s5 + $0x74] sm:$0xf]
        %v786 = vld [vmem:[%s5 + $0x78] sm:$0xf]
        %v787 = vld [vmem:[%s5 + $0x7c] sm:$0xf]
        %v788 = vld [vmem:[%s6] sm:$0x1]
        %v790 = vlaneseq
        %v791 = vshrl.u32 %v790, 7
        %v792 = vsub.s32 0, %v791
        %v793 = vrot.slane %v788, %v792
        %v827 = vunpack.c.l.b16 %v756
        %v828 = vunpack.c.l.b16 %v757
        %v829 = vunpack.c.l.b16 %v758
        %v830 = vunpack.c.l.b16 %v759
        %v831 = vunpack.c.l.b16 %v760
        %v832 = vunpack.c.l.b16 %v761
        %v833 = vunpack.c.l.b16 %v762
        %v834 = vunpack.c.l.b16 %v763
        %v835 = vunpack.c.l.b16 %v764
        %v836 = vunpack.c.l.b16 %v765
        %v837 = vunpack.c.l.b16 %v766
        %v838 = vunpack.c.l.b16 %v767
        %v839 = vunpack.c.l.b16 %v768
        %v840 = vunpack.c.l.b16 %v769
        %v841 = vunpack.c.l.b16 %v770
        %v842 = vunpack.c.l.b16 %v771
        %v843 = vunpack.c.l.b16 %v772
        %v844 = vunpack.c.l.b16 %v773
        %v845 = vunpack.c.l.b16 %v774
        %v846 = vunpack.c.l.b16 %v775
        %v847 = vunpack.c.l.b16 %v776
        %v848 = vunpack.c.l.b16 %v777
        %v849 = vunpack.c.l.b16 %v778
        %v850 = vunpack.c.l.b16 %v779
        %v851 = vunpack.c.l.b16 %v780
        %v852 = vunpack.c.l.b16 %v781
        %v853 = vunpack.c.l.b16 %v782
        %v854 = vunpack.c.l.b16 %v783
        %v855 = vunpack.c.l.b16 %v784
        %v856 = vunpack.c.l.b16 %v785
        %v857 = vunpack.c.l.b16 %v786
        %v858 = vunpack.c.l.b16 %v787
        %v859 = vpack.c.b16 %v828, %v827
        %v860 = vpack.c.b16 %v830, %v829
        %v861 = vpack.c.b16 %v832, %v831
        %v862 = vpack.c.b16 %v834, %v833
        %v863 = vpack.c.b16 %v836, %v835
        %v864 = vpack.c.b16 %v838, %v837
        %v865 = vpack.c.b16 %v840, %v839
        %v866 = vpack.c.b16 %v842, %v841
        %v867 = vpack.c.b16 %v844, %v843
        %v868 = vpack.c.b16 %v846, %v845
        %v869 = vpack.c.b16 %v848, %v847
        %v870 = vpack.c.b16 %v850, %v849
        %v871 = vpack.c.b16 %v852, %v851
        %v872 = vpack.c.b16 %v854, %v853
        %v873 = vpack.c.b16 %v856, %v855
        %v874 = vpack.c.b16 %v858, %v857
        %891 = vmatprep.subr.bf16.mxu0 0
        %892 = vmatpush1.bf16.msra.mxu0 %v859
        %893 = vmatprep.subr.bf16.mxu0 0
        %894 = vmatpush1.bf16.msra.mxu0 %v860
        %895 = vmatprep.subr.bf16.mxu0 0
        %896 = vmatpush1.bf16.msra.mxu0 %v861
        %897 = vmatprep.subr.bf16.mxu0 0
        %898 = vmatpush1.bf16.msra.mxu0 %v862
        %899 = vmatprep.subr.bf16.mxu0 0
        %900 = vmatpush1.bf16.msra.mxu0 %v863
        %901 = vmatprep.subr.bf16.mxu0 0
        %902 = vmatpush1.bf16.msra.mxu0 %v864
        %903 = vmatprep.subr.bf16.mxu0 0
        %904 = vmatpush1.bf16.msra.mxu0 %v865
        %905 = vmatprep.subr.bf16.mxu0 0
        %906 = vmatpush1.bf16.msra.mxu0 %v866
        %907 = vmatprep.subr.bf16.mxu0 0
        %908 = vmatpush1.bf16.msra.mxu0 %v867
        %909 = vmatprep.subr.bf16.mxu0 0
        %910 = vmatpush1.bf16.msra.mxu0 %v868
        %911 = vmatprep.subr.bf16.mxu0 0
        %912 = vmatpush1.bf16.msra.mxu0 %v869
        %913 = vmatprep.subr.bf16.mxu0 0
        %914 = vmatpush1.bf16.msra.mxu0 %v870
        %915 = vmatprep.subr.bf16.mxu0 0
        %916 = vmatpush1.bf16.msra.mxu0 %v871
        %917 = vmatprep.subr.bf16.mxu0 0
        %918 = vmatpush1.bf16.msra.mxu0 %v872
        %919 = vmatprep.subr.bf16.mxu0 0
        %920 = vmatpush1.bf16.msra.mxu0 %v873
        %921 = vmatprep.subr.bf16.mxu0 0
        %922 = vmatpush1.bf16.msra.mxu0 %v874
        %923 = vmatprep.mubr.bf16.mxu0 %v755
        %924 = vmatmul.mubr.bf16.gmra.mrb[0].mxu0 %v754
        %v925 = vpop.f32.mrb[0].mxu0
        %v926 = vadd.f32 %v793, %v925
        %v927 = vpop.f32.mrb[0].mxu0
        %v928 = vpop.f32.mrb[0].mxu0
        %v929 = vpop.f32.mrb[0].mxu0
        %930 = vdwg.mxu0
        %vm931 = vcmask 56320
        %932 = vst.msk [vmem:[%s288] sm:$0xff] %vm931, %v926
        %p933 = scmp.lt.s32.totalorder %s19, 1
        %s934 = scalar_select %p933, %s19, 1
        %s935 = smul.addr %s934, 8
        %s936 = scalar_lea.vmem %s7, %s935
        // Predicated region
        $region53: #{tpu_custom_call.1} parent=47 // pred_check
          %p937 = pneg %p189
        $region54: #{tpu_custom_call.1} parent=47 // pred_check_branch
          %939 = sbr.rel (%p937) target = $region56
        $region55: #{tpu_custom_call.1} parent=47 // pred_region
          _
        $region56: #{tpu_custom_call.1} parent=47 // pred_fallthru
          _
      $region48: #{tpu_custom_call.1} parent=5 // pred_fallthru
        _
      %p940 = scmp.le.s32.totalorder 2, %s14
      // Predicated region
      $region57: #{tpu_custom_call.1} parent=5 // pred_check
        %p941 = pneg %p940
      $region58: #{tpu_custom_call.1} parent=5 // pred_check_branch
        %943 = sbr.rel (%p941) target = $region60
      $region59: #{tpu_custom_call.1} parent=5 // pred_region
        %s944 = ssub.s32 %s14, 2
        // Predicated region
        $region61: #{tpu_custom_call.1} parent=59 // pred_check
          %p945 = pneg %p195
        $region62: #{tpu_custom_call.1} parent=59 // pred_check_branch
          %947 = sbr.rel (%p945) target = $region64
        $region63: #{tpu_custom_call.1} parent=59 // pred_region
          %p948 = scmp.lt.s32.totalorder %s20, 1
          %s949 = scalar_select %p948, %s20, 1
          %s950 = smul.addr %s949, 8
          %s951 = scalar_lea.vmem %s7, %s950
        $region64: #{tpu_custom_call.1} parent=59 // pred_fallthru
          _
      $region60: #{tpu_custom_call.1} parent=5 // pred_fallthru
        _
    $region6: #{tpu_custom_call.1} parent=1 // loop_footer
      %s18 = sadd.s32 1, %s14
    $region7: #{tpu_custom_call.1} parent=1 // loop_footer_branch
      %13 = sbr.rel target = $region3
    $region8: #{tpu_custom_call.1} parent=1 // loop_exit
      _
    %952 = vsyncpa [#allocation3], 1
    %s953 = scalar_lea.sflag [#allocation3], 1
    %954 = vsyncpa %s953, 1

</llo_original>
